<compile_context>
chip_gen: v7x
topology: tpu7x:2x2x1
jax: 0.10.0
libtpu: 0.0.40
codegen_flags: <defaults>
</compile_context>

<pallas_src>
import functools

import jax
import jax.numpy as jnp
from jax.experimental import pallas as pl
from jax.experimental.pallas import tpu as pltpu

BN_EPS = 1e-5
LANE = 128


def _round_up(n, m):
    return ((n + m - 1) // m) * m


def _gtdqn_kernel(x_ref,
                  w1_ref, aux1_ref,
                  w2_ref, aux2_ref,
                  wo_ref, bo_ref,
                  out_ref, *, inv_batch):
    """Whole network in one invocation; everything resident in VMEM.

    aux refs are packed (3, Hp) f32: row 0 = linear bias, row 1 = BN gamma,
    row 2 = BN beta.  Weights are bf16 (in, out); matmuls accumulate in f32.
    """
    x = x_ref[...]  # (B, Dp) f32

    def hidden_block(h_in_f32, w_ref, aux_ref):
        aux = aux_ref[...]                       # (3, Hp) f32
        bias, gamma, beta = aux[0:1, :], aux[1:2, :], aux[2:3, :]

        # Linear (MXU, bf16 x bf16 -> f32 accumulate) + bias + ReLU (VPU, f32).
        h = jnp.dot(h_in_f32.astype(jnp.bfloat16), w_ref[...],
                    preferred_element_type=jnp.float32)
        h = jnp.maximum(h + bias, 0.0)

        # BatchNorm1d (training mode) with fused single-pass statistics:
        # one reduction pass producing sum and sum-of-squares.
        s = jnp.sum(h, axis=0, keepdims=True)
        sq = jnp.sum(h * h, axis=0, keepdims=True)
        mean = s * inv_batch
        var = jnp.maximum(sq * inv_batch - mean * mean, 0.0)  # biased variance
        h = (h - mean) * jax.lax.rsqrt(var + BN_EPS)
        h = h * gamma + beta
        # Dropout(0.1): identity (eval semantics).
        return h

    h1 = hidden_block(x, w1_ref, aux1_ref)
    h2 = hidden_block(h1, w2_ref, aux2_ref)

    q = jnp.dot(h2.astype(jnp.bfloat16), wo_ref[...],
                preferred_element_type=jnp.float32)
    out_ref[...] = (q + bo_ref[...]).astype(out_ref.dtype)


def _full_spec(shape):
    # Every operand is tiny; block == full array (grid-less call).
    return pl.BlockSpec(shape, lambda: tuple(0 for _ in shape))


@functools.partial(jax.jit, static_argnames=("num_actions",))
def gtdqn_forward(x, params, num_actions):
    """x: (batch, state_dim) f32.  Returns (batch, num_actions) f32 Q-values."""
    w1, aux1, w2, aux2, wo, bo = params
    batch, d_in = x.shape
    d_pad, h_pad = w1.shape
    n_pad = wo.shape[1]

    # Zero-pad the input features to the lane-dense width used by the weights.
    x_p = jnp.pad(x.astype(jnp.float32), ((0, 0), (0, d_pad - d_in)))

    operands = (x_p, w1, aux1, w2, aux2, wo, bo)

    flops = 2 * batch * (d_pad * h_pad + h_pad * h_pad + h_pad * n_pad)
    bytes_accessed = (sum(int(o.size) * o.dtype.itemsize for o in operands)
                      + batch * n_pad * 4)

    q_pad = pl.pallas_call(
        functools.partial(_gtdqn_kernel, inv_batch=1.0 / batch),
        out_shape=jax.ShapeDtypeStruct((batch, n_pad), jnp.float32),
        in_specs=[_full_spec(o.shape) for o in operands],
        out_specs=_full_spec((batch, n_pad)),
        cost_estimate=pl.CostEstimate(
            flops=flops,
            transcendentals=2 * h_pad,          # two rsqrt passes over (1, Hp)
            bytes_accessed=bytes_accessed),
        compiler_params=pltpu.CompilerParams(
            vmem_limit_bytes=32 * 1024 * 1024),
    )(*operands)

    # Slice the real action columns out of the lane-dense padded output.
    return q_pad[:, :num_actions]


def init_gtdqn_params(key, state_dim, num_actions, hidden_size):
    """Deterministic Kaiming-normal init, pre-padded to lane-dense (128) widths.

    Weights are stored (in, out) in bf16; padded rows/cols are zero.  Per-layer
    (bias, gamma, beta) are packed into one (3, Hp) f32 array; padded gamma
    columns are ZERO so padded features stay exactly zero through BatchNorm.
    """
    d_pad = _round_up(state_dim, LANE)
    h_pad = _round_up(hidden_size, LANE)
    n_pad = _round_up(num_actions, LANE)

    k1, k2, k3 = jax.random.split(key, 3)

    def kaiming_padded(k, fan_in, fan_out, pad_in, pad_out):
        std = jnp.sqrt(2.0 / fan_in)
        w = jax.random.normal(k, (fan_in, fan_out), jnp.float32) * std
        w = jnp.pad(w, ((0, pad_in - fan_in), (0, pad_out - fan_out)))
        return w.astype(jnp.bfloat16)

    def aux_pack(width, pad_width):
        bias = jnp.zeros((1, pad_width), jnp.float32)
        gamma = jnp.pad(jnp.ones((1, width), jnp.float32),
                        ((0, 0), (0, pad_width - width)))
        beta = jnp.zeros((1, pad_width), jnp.float32)
        return jnp.concatenate([bias, gamma, beta], axis=0)

    w1 = kaiming_padded(k1, state_dim, hidden_size, d_pad, h_pad)
    aux1 = aux_pack(hidden_size, h_pad)
    w2 = kaiming_padded(k2, hidden_size, hidden_size, h_pad, h_pad)
    aux2 = aux_pack(hidden_size, h_pad)
    wo = kaiming_padded(k3, hidden_size, num_actions, h_pad, n_pad)
    bo = jnp.zeros((1, n_pad), jnp.float32)

    return (w1, aux1, w2, aux2, wo, bo)


def gtdqn_reference(x, params, num_actions):
    """Pure-JAX reference with identical numerics (bf16 matmul inputs, f32 math)."""
    w1, aux1, w2, aux2, wo, bo = params
    d_pad = w1.shape[0]
    x = jnp.pad(x.astype(jnp.float32), ((0, 0), (0, d_pad - x.shape[1])))

    def block(h, w, aux):
        h = jnp.dot(h.astype(jnp.bfloat16), w, preferred_element_type=jnp.float32)
        h = jnp.maximum(h + aux[0:1], 0.0)
        mean = jnp.mean(h, axis=0, keepdims=True)
        var = jnp.mean((h - mean) ** 2, axis=0, keepdims=True)
        h = (h - mean) * jax.lax.rsqrt(var + BN_EPS)
        return h * aux[1:2] + aux[2:3]

    h = block(x, w1, aux1)
    h = block(h, w2, aux2)
    q = jnp.dot(h.astype(jnp.bfloat16), wo,
                preferred_element_type=jnp.float32) + bo
    return q[:, :num_actions]


if __name__ == "__main__":
    # Small shapes consistent with the module: 4-dim state vectors (as in
    # select_action), module-default hidden_size=128, 16 actions, batch 8
    # (sublane-aligned).
    BATCH = 8
    STATE_DIM = 4
    NUM_ACTIONS = 16
    HIDDEN = 128

    key = jax.random.PRNGKey(0)
    k_param, k_x = jax.random.split(key)

    params = init_gtdqn_params(k_param, STATE_DIM, NUM_ACTIONS, HIDDEN)
    x = jax.random.normal(k_x, (BATCH, STATE_DIM), jnp.float32)

    q = gtdqn_forward(x, params, NUM_ACTIONS)
    q = jax.block_until_ready(q)

    q_ref = gtdqn_reference(x, params, NUM_ACTIONS)
    assert q.shape == (BATCH, NUM_ACTIONS)
    max_err = jnp.max(jnp.abs(q - q_ref))
    assert jnp.allclose(q, q_ref, atol=1e-3, rtol=1e-3), (
        f"max abs err {max_err}")

    print("KERNEL_OK")
</pallas_src>

<mosaic_0001>
module attributes {stable_mosaic.version = 11 : i64} {
  func.func @_gtdqn_kernel(%arg0: memref<8x128xf32, #tpu.memory_space<vmem>>, %arg1: memref<128x128xbf16, #tpu.memory_space<vmem>>, %arg2: memref<3x128xf32, #tpu.memory_space<vmem>>, %arg3: memref<128x128xbf16, #tpu.memory_space<vmem>>, %arg4: memref<3x128xf32, #tpu.memory_space<vmem>>, %arg5: memref<128x128xbf16, #tpu.memory_space<vmem>>, %arg6: memref<1x128xf32, #tpu.memory_space<vmem>>, %arg7: memref<8x128xf32, #tpu.memory_space<vmem>>) attributes {dimension_semantics = [], scalar_prefetch = 0 : i64, scratch_operands = 0 : i64, tpu.core_type = #tpu.core_type<tc>} {
    %c0 = arith.constant 0 : index
    %c0_0 = arith.constant 0 : index
    %0 = vector.load %arg0[%c0, %c0_0] : memref<8x128xf32, #tpu.memory_space<vmem>>, vector<8x128xf32>
    %c0_1 = arith.constant 0 : index
    %c0_2 = arith.constant 0 : index
    %1 = vector.load %arg2[%c0_1, %c0_2] : memref<3x128xf32, #tpu.memory_space<vmem>>, vector<3x128xf32>
    %2 = vector.extract_strided_slice %1 {offsets = [0, 0], sizes = [1, 128], strides = [1, 1]} : vector<3x128xf32> to vector<1x128xf32>
    %3 = vector.extract_strided_slice %1 {offsets = [1, 0], sizes = [1, 128], strides = [1, 1]} : vector<3x128xf32> to vector<1x128xf32>
    %4 = vector.extract_strided_slice %1 {offsets = [2, 0], sizes = [1, 128], strides = [1, 1]} : vector<3x128xf32> to vector<1x128xf32>
    %5 = arith.truncf %0 : vector<8x128xf32> to vector<8x128xbf16>
    %c0_3 = arith.constant 0 : index
    %c0_4 = arith.constant 0 : index
    %6 = vector.load %arg1[%c0_3, %c0_4] : memref<128x128xbf16, #tpu.memory_space<vmem>>, vector<128x128xbf16>
    %cst = arith.constant dense<0.000000e+00> : vector<8x128xf32>
    %7 = tpu.matmul %5, %6, %cst {dimension_numbers = #tpu.dot_dimension_numbers<[1], [0], [0], [1], [0, 0, 1, 1], [], []>} : vector<8x128xbf16>, vector<128x128xbf16>, vector<8x128xf32> -> vector<8x128xf32>
    %8 = vector.broadcast %2 : vector<1x128xf32> to vector<8x128xf32>
    %9 = arith.addf %7, %8 : vector<8x128xf32>
    %cst_5 = arith.constant 0.000000e+00 : f32
    %10 = vector.broadcast %cst_5 : f32 to vector<8x128xf32>
    %11 = arith.maximumf %9, %10 : vector<8x128xf32>
    %cst_6 = arith.constant dense<0.000000e+00> : vector<128xf32>
    %12 = vector.multi_reduction <add>, %11, %cst_6 [0] : vector<8x128xf32> to vector<128xf32>
    %13 = vector.shape_cast %12 : vector<128xf32> to vector<1x128xf32>
    %14 = arith.mulf %11, %11 : vector<8x128xf32>
    %cst_7 = arith.constant dense<0.000000e+00> : vector<128xf32>
    %15 = vector.multi_reduction <add>, %14, %cst_7 [0] : vector<8x128xf32> to vector<128xf32>
    %16 = vector.shape_cast %15 : vector<128xf32> to vector<1x128xf32>
    %cst_8 = arith.constant 1.250000e-01 : f32
    %17 = vector.broadcast %cst_8 : f32 to vector<1x128xf32>
    %18 = arith.mulf %13, %17 : vector<1x128xf32>
    %cst_9 = arith.constant 1.250000e-01 : f32
    %19 = vector.broadcast %cst_9 : f32 to vector<1x128xf32>
    %20 = arith.mulf %16, %19 : vector<1x128xf32>
    %21 = arith.mulf %18, %18 : vector<1x128xf32>
    %22 = arith.subf %20, %21 : vector<1x128xf32>
    %cst_10 = arith.constant 0.000000e+00 : f32
    %23 = vector.broadcast %cst_10 : f32 to vector<1x128xf32>
    %24 = arith.maximumf %22, %23 : vector<1x128xf32>
    %25 = vector.broadcast %18 : vector<1x128xf32> to vector<8x128xf32>
    %26 = arith.subf %11, %25 : vector<8x128xf32>
    %cst_11 = arith.constant 9.99999974E-6 : f32
    %27 = vector.broadcast %cst_11 : f32 to vector<1x128xf32>
    %28 = arith.addf %24, %27 : vector<1x128xf32>
    %29 = math.rsqrt %28 : vector<1x128xf32>
    %30 = vector.broadcast %29 : vector<1x128xf32> to vector<8x128xf32>
    %31 = arith.mulf %26, %30 : vector<8x128xf32>
    %32 = vector.broadcast %3 : vector<1x128xf32> to vector<8x128xf32>
    %33 = arith.mulf %31, %32 : vector<8x128xf32>
    %34 = vector.broadcast %4 : vector<1x128xf32> to vector<8x128xf32>
    %35 = arith.addf %33, %34 : vector<8x128xf32>
    %c0_12 = arith.constant 0 : index
    %c0_13 = arith.constant 0 : index
    %36 = vector.load %arg4[%c0_12, %c0_13] : memref<3x128xf32, #tpu.memory_space<vmem>>, vector<3x128xf32>
    %37 = vector.extract_strided_slice %36 {offsets = [0, 0], sizes = [1, 128], strides = [1, 1]} : vector<3x128xf32> to vector<1x128xf32>
    %38 = vector.extract_strided_slice %36 {offsets = [1, 0], sizes = [1, 128], strides = [1, 1]} : vector<3x128xf32> to vector<1x128xf32>
    %39 = vector.extract_strided_slice %36 {offsets = [2, 0], sizes = [1, 128], strides = [1, 1]} : vector<3x128xf32> to vector<1x128xf32>
    %40 = arith.truncf %35 : vector<8x128xf32> to vector<8x128xbf16>
    %c0_14 = arith.constant 0 : index
    %c0_15 = arith.constant 0 : index
    %41 = vector.load %arg3[%c0_14, %c0_15] : memref<128x128xbf16, #tpu.memory_space<vmem>>, vector<128x128xbf16>
    %cst_16 = arith.constant dense<0.000000e+00> : vector<8x128xf32>
    %42 = tpu.matmul %40, %41, %cst_16 {dimension_numbers = #tpu.dot_dimension_numbers<[1], [0], [0], [1], [0, 0, 1, 1], [], []>} : vector<8x128xbf16>, vector<128x128xbf16>, vector<8x128xf32> -> vector<8x128xf32>
    %43 = vector.broadcast %37 : vector<1x128xf32> to vector<8x128xf32>
    %44 = arith.addf %42, %43 : vector<8x128xf32>
    %cst_17 = arith.constant 0.000000e+00 : f32
    %45 = vector.broadcast %cst_17 : f32 to vector<8x128xf32>
    %46 = arith.maximumf %44, %45 : vector<8x128xf32>
    %cst_18 = arith.constant dense<0.000000e+00> : vector<128xf32>
    %47 = vector.multi_reduction <add>, %46, %cst_18 [0] : vector<8x128xf32> to vector<128xf32>
    %48 = vector.shape_cast %47 : vector<128xf32> to vector<1x128xf32>
    %49 = arith.mulf %46, %46 : vector<8x128xf32>
    %cst_19 = arith.constant dense<0.000000e+00> : vector<128xf32>
    %50 = vector.multi_reduction <add>, %49, %cst_19 [0] : vector<8x128xf32> to vector<128xf32>
    %51 = vector.shape_cast %50 : vector<128xf32> to vector<1x128xf32>
    %cst_20 = arith.constant 1.250000e-01 : f32
    %52 = vector.broadcast %cst_20 : f32 to vector<1x128xf32>
    %53 = arith.mulf %48, %52 : vector<1x128xf32>
    %cst_21 = arith.constant 1.250000e-01 : f32
    %54 = vector.broadcast %cst_21 : f32 to vector<1x128xf32>
    %55 = arith.mulf %51, %54 : vector<1x128xf32>
    %56 = arith.mulf %53, %53 : vector<1x128xf32>
    %57 = arith.subf %55, %56 : vector<1x128xf32>
    %cst_22 = arith.constant 0.000000e+00 : f32
    %58 = vector.broadcast %cst_22 : f32 to vector<1x128xf32>
    %59 = arith.maximumf %57, %58 : vector<1x128xf32>
    %60 = vector.broadcast %53 : vector<1x128xf32> to vector<8x128xf32>
    %61 = arith.subf %46, %60 : vector<8x128xf32>
    %cst_23 = arith.constant 9.99999974E-6 : f32
    %62 = vector.broadcast %cst_23 : f32 to vector<1x128xf32>
    %63 = arith.addf %59, %62 : vector<1x128xf32>
    %64 = math.rsqrt %63 : vector<1x128xf32>
    %65 = vector.broadcast %64 : vector<1x128xf32> to vector<8x128xf32>
    %66 = arith.mulf %61, %65 : vector<8x128xf32>
    %67 = vector.broadcast %38 : vector<1x128xf32> to vector<8x128xf32>
    %68 = arith.mulf %66, %67 : vector<8x128xf32>
    %69 = vector.broadcast %39 : vector<1x128xf32> to vector<8x128xf32>
    %70 = arith.addf %68, %69 : vector<8x128xf32>
    %71 = arith.truncf %70 : vector<8x128xf32> to vector<8x128xbf16>
    %c0_24 = arith.constant 0 : index
    %c0_25 = arith.constant 0 : index
    %72 = vector.load %arg5[%c0_24, %c0_25] : memref<128x128xbf16, #tpu.memory_space<vmem>>, vector<128x128xbf16>
    %cst_26 = arith.constant dense<0.000000e+00> : vector<8x128xf32>
    %73 = tpu.matmul %71, %72, %cst_26 {dimension_numbers = #tpu.dot_dimension_numbers<[1], [0], [0], [1], [0, 0, 1, 1], [], []>} : vector<8x128xbf16>, vector<128x128xbf16>, vector<8x128xf32> -> vector<8x128xf32>
    %c0_27 = arith.constant 0 : index
    %c0_28 = arith.constant 0 : index
    %74 = vector.load %arg6[%c0_27, %c0_28] : memref<1x128xf32, #tpu.memory_space<vmem>>, vector<1x128xf32>
    %75 = vector.broadcast %74 : vector<1x128xf32> to vector<8x128xf32>
    %76 = arith.addf %73, %75 : vector<8x128xf32>
    %c0_29 = arith.constant 0 : index
    %c0_30 = arith.constant 0 : index
    %77 = vector.load %arg7[%c0_29, %c0_30] : memref<8x128xf32, #tpu.memory_space<vmem>>, vector<8x128xf32>
    tpu.vector_store %arg7[%c0_29, %c0_30], %76 {strides = array<i32>} : memref<8x128xf32, #tpu.memory_space<vmem>>, vector<8x128xf32>,
    return
  }
}

</mosaic_0001>

<llo_original>
// kernel: gtdqn_forward.1
$region0: #{gtdqn_forward.1}
  #allocation0 [shape = 'u32[]', space=smem, size = 0x4, offset = 0x4, fixed_abs, tag = 'smem constant byte address 0x4 - core index']
  #allocation1 [shape = 'u32[144,128]{1,0:T(1,128)}', space=vmem, size = 0x12000, scoped, tag = 'internal scratch']
  %s0 = inlined_call_operand.vmem [shape: f32[8,128], index: 0, kind: input, shape index: {}]
  %s1 = inlined_call_operand.hbm [shape: bf16[128,128], index: 1, kind: input, shape index: {}]
  %s2 = inlined_call_operand.vmem [shape: f32[3,128], index: 2, kind: input, shape index: {}]
  %s3 = inlined_call_operand.hbm [shape: bf16[128,128], index: 3, kind: input, shape index: {}]
  %s4 = inlined_call_operand.vmem [shape: f32[3,128], index: 4, kind: input, shape index: {}]
  %s5 = inlined_call_operand.hbm [shape: bf16[128,128], index: 5, kind: input, shape index: {}]
  %s6 = inlined_call_operand.vmem [shape: f32[1,128], index: 6, kind: input, shape index: {}]
  %s7 = inlined_call_operand.hbm [shape: f32[8,128], index: 7, kind: output, shape index: {}]
  %s8 = sld [smem:[#allocation0]]
  $region50: #{gtdqn_forward.1} parent=0
    _
  %s10 = ssub.s32 1, %s8
  %s11 = scalar_select 0, %s10, %s8
  $region1: #{gtdqn_forward.1} parent=0
    #allocation2 [shape = 'u8[32768]{0}', space=vmem, size = 0x8000, scoped, tag = 'input window, operand 1, single buffered']
    #allocation3 [shape = 's32[1]{0}', space=sflag, size = 0x4, scoped, tag = 'scoped memory for gtdqn_forward.1']
    #allocation4 [shape = 's32[1]{0}', space=sflag, size = 0x4, scoped, tag = 'scoped memory for gtdqn_forward.1']
    #allocation5 [shape = 'u8[32768]{0}', space=vmem, size = 0x8000, scoped, tag = 'input window, operand 3, single buffered']
    #allocation6 [shape = 's32[1]{0}', space=sflag, size = 0x4, scoped, tag = 'scoped memory for gtdqn_forward.1']
    #allocation7 [shape = 'u8[32768]{0}', space=vmem, size = 0x8000, scoped, tag = 'input window, operand 5, single buffered']
    #allocation8 [shape = 'u8[4096]{0}', space=vmem, size = 0x1000, scoped, tag = 'output window, operand 0, single buffered']
    %12 = vsyncpa [#allocation3], 0
    %13 = vsyncpa [#allocation6], 0
    %14 = vsyncpa [#allocation4], 0
    // Predicated region
    $region2: #{gtdqn_forward.1} parent=1 // pred_check
      _
    $region3: #{gtdqn_forward.1} parent=1 // pred_check_branch
      %16 = sbr.rel (0) target = $region5
    $region4: #{gtdqn_forward.1} parent=1 // pred_region
      _
    $region5: #{gtdqn_forward.1} parent=1 // pred_fallthru
      _
    // Predicated region
    $region6: #{gtdqn_forward.1} parent=1 // pred_check
      _
    $region7: #{gtdqn_forward.1} parent=1 // pred_check_branch
      %18 = sbr.rel (0) target = $region9
    $region8: #{gtdqn_forward.1} parent=1 // pred_region
      %s20 = ssub.s32 1024, 1024
      %21 = vsyncadd [#allocation3], %s20
      %s22 = sshll.u32 [#allocation2], 4
      %s23 = int_to_ptr.vmem [resolvable:$true] %s22
      %28 = dma.hbm_to_vmem [thread:$0]  %s1, 1024, %s23, [#allocation3], 64, 64, 4
    $region9: #{gtdqn_forward.1} parent=1 // pred_fallthru
      _
    // Predicated region
    $region10: #{gtdqn_forward.1} parent=1 // pred_check
      _
    $region11: #{gtdqn_forward.1} parent=1 // pred_check_branch
      %30 = sbr.rel (0) target = $region13
    $region12: #{gtdqn_forward.1} parent=1 // pred_region
      _
    $region13: #{gtdqn_forward.1} parent=1 // pred_fallthru
      _
    // Predicated region
    $region14: #{gtdqn_forward.1} parent=1 // pred_check
      _
    $region15: #{gtdqn_forward.1} parent=1 // pred_check_branch
      %32 = sbr.rel (0) target = $region17
    $region16: #{gtdqn_forward.1} parent=1 // pred_region
      %s34 = ssub.s32 1024, 1024
      %35 = vsyncadd [#allocation6], %s34
      %s36 = sshll.u32 [#allocation5], 4
      %s37 = int_to_ptr.vmem [resolvable:$true] %s36
      %42 = dma.hbm_to_vmem [thread:$0]  %s3, 1024, %s37, [#allocation6], 64, 64, 4
    $region17: #{gtdqn_forward.1} parent=1 // pred_fallthru
      _
    // Predicated region
    $region18: #{gtdqn_forward.1} parent=1 // pred_check
      _
    $region19: #{gtdqn_forward.1} parent=1 // pred_check_branch
      %44 = sbr.rel (0) target = $region21
    $region20: #{gtdqn_forward.1} parent=1 // pred_region
      _
    $region21: #{gtdqn_forward.1} parent=1 // pred_fallthru
      _
    // Predicated region
    $region22: #{gtdqn_forward.1} parent=1 // pred_check
      _
    $region23: #{gtdqn_forward.1} parent=1 // pred_check_branch
      %46 = sbr.rel (0) target = $region25
    $region24: #{gtdqn_forward.1} parent=1 // pred_region
      %s48 = ssub.s32 1024, 1024
      %49 = vsyncadd [#allocation6], %s48
      %s50 = sshll.u32 [#allocation7], 4
      %s51 = int_to_ptr.vmem [resolvable:$true] %s50
      %56 = dma.hbm_to_vmem [thread:$0]  %s5, 1024, %s51, [#allocation6], 64, 64, 4
    $region25: #{gtdqn_forward.1} parent=1 // pred_fallthru
      _
    // Predicated region
    $region26: #{gtdqn_forward.1} parent=1 // pred_check
      _
    $region27: #{gtdqn_forward.1} parent=1 // pred_check_branch
      %58 = sbr.rel (0) target = $region29
    $region28: #{gtdqn_forward.1} parent=1 // pred_region
      _
    $region29: #{gtdqn_forward.1} parent=1 // pred_fallthru
      _
    // Predicated region
    $region30: #{gtdqn_forward.1} parent=1 // pred_check
      _
    $region31: #{gtdqn_forward.1} parent=1 // pred_check_branch
      %60 = sbr.rel (0) target = $region33
    $region32: #{gtdqn_forward.1} parent=1 // pred_region
      %61 = dma.done [#allocation3], 1024
    $region33: #{gtdqn_forward.1} parent=1 // pred_fallthru
      _
    // Predicated region
    $region34: #{gtdqn_forward.1} parent=1 // pred_check
      _
    $region35: #{gtdqn_forward.1} parent=1 // pred_check_branch
      %63 = sbr.rel (0) target = $region37
    $region36: #{gtdqn_forward.1} parent=1 // pred_region
      %64 = dma.done [#allocation6], 1024
    $region37: #{gtdqn_forward.1} parent=1 // pred_fallthru
      _
    // Predicated region
    $region38: #{gtdqn_forward.1} parent=1 // pred_check
      _
    $region39: #{gtdqn_forward.1} parent=1 // pred_check_branch
      %66 = sbr.rel (0) target = $region41
    $region40: #{gtdqn_forward.1} parent=1 // pred_region
      %67 = dma.done [#allocation6], 1024
    $region41: #{gtdqn_forward.1} parent=1 // pred_fallthru
      _
    %v69 = vld [vmem:[%s0] sm:$0xff]
    %v70 = vld [vmem:[%s2] sm:$0x7]
    %v71 = vpack.c.bf16 %v69, %v69
    %v72 = vld [vmem:[#allocation2] sm:$0xf]
    %v73 = vld [vmem:[#allocation2 + $0x4] sm:$0xf]
    %v74 = vld [vmem:[#allocation2 + $0x8] sm:$0xf]
    %v75 = vld [vmem:[#allocation2 + $0xc] sm:$0xf]
    %v76 = vld [vmem:[#allocation2 + $0x10] sm:$0xf]
    %v77 = vld [vmem:[#allocation2 + $0x14] sm:$0xf]
    %v78 = vld [vmem:[#allocation2 + $0x18] sm:$0xf]
    %v79 = vld [vmem:[#allocation2 + $0x1c] sm:$0xf]
    %v80 = vld [vmem:[#allocation2 + $0x20] sm:$0xf]
    %v81 = vld [vmem:[#allocation2 + $0x24] sm:$0xf]
    %v82 = vld [vmem:[#allocation2 + $0x28] sm:$0xf]
    %v83 = vld [vmem:[#allocation2 + $0x2c] sm:$0xf]
    %v84 = vld [vmem:[#allocation2 + $0x30] sm:$0xf]
    %v85 = vld [vmem:[#allocation2 + $0x34] sm:$0xf]
    %v86 = vld [vmem:[#allocation2 + $0x38] sm:$0xf]
    %v87 = vld [vmem:[#allocation2 + $0x3c] sm:$0xf]
    %v88 = vlaneseq
    %v89 = vshrl.u32 %v88, 7
    %v90 = vsub.s32 0, %v89
    %v91 = vrot.slane %v70, %v90
    %v108 = vunpack.c.l.b16 %v72
    %v109 = vunpack.c.l.b16 %v73
    %v110 = vunpack.c.l.b16 %v74
    %v111 = vunpack.c.l.b16 %v75
    %v112 = vunpack.c.l.b16 %v76
    %v113 = vunpack.c.l.b16 %v77
    %v114 = vunpack.c.l.b16 %v78
    %v115 = vunpack.c.l.b16 %v79
    %v116 = vunpack.c.l.b16 %v80
    %v117 = vunpack.c.l.b16 %v81
    %v118 = vunpack.c.l.b16 %v82
    %v119 = vunpack.c.l.b16 %v83
    %v120 = vunpack.c.l.b16 %v84
    %v121 = vunpack.c.l.b16 %v85
    %v122 = vunpack.c.l.b16 %v86
    %v123 = vunpack.c.l.b16 %v87
    %v124 = vpack.c.b16 %v109, %v108
    %v125 = vpack.c.b16 %v111, %v110
    %v126 = vpack.c.b16 %v113, %v112
    %v127 = vpack.c.b16 %v115, %v114
    %v128 = vpack.c.b16 %v117, %v116
    %v129 = vpack.c.b16 %v119, %v118
    %v130 = vpack.c.b16 %v121, %v120
    %v131 = vpack.c.b16 %v123, %v122
    %140 = vmatprep.subr.bf16.mxu0 0
    %141 = vmatpush1.bf16.msra.mxu0 %v124
    %142 = vmatprep.subr.bf16.mxu0 0
    %143 = vmatpush1.bf16.msra.mxu0 %v125
    %144 = vmatprep.subr.bf16.mxu0 0
    %145 = vmatpush1.bf16.msra.mxu0 %v126
    %146 = vmatprep.subr.bf16.mxu0 0
    %147 = vmatpush1.bf16.msra.mxu0 %v127
    %148 = vmatprep.subr.bf16.mxu0 0
    %149 = vmatpush1.bf16.msra.mxu0 %v128
    %150 = vmatprep.subr.bf16.mxu0 0
    %151 = vmatpush1.bf16.msra.mxu0 %v129
    %152 = vmatprep.subr.bf16.mxu0 0
    %153 = vmatpush1.bf16.msra.mxu0 %v130
    %154 = vmatprep.subr.bf16.mxu0 0
    %155 = vmatpush1.bf16.msra.mxu0 %v131
    %156 = vmatprep.subr.bf16.mxu0 0
    %157 = vmatpush1.bf16.msra.mxu0 0
    %158 = vmatprep.subr.bf16.mxu0 0
    %159 = vmatpush1.bf16.msra.mxu0 0
    %160 = vmatprep.subr.bf16.mxu0 0
    %161 = vmatpush1.bf16.msra.mxu0 0
    %162 = vmatprep.subr.bf16.mxu0 0
    %163 = vmatpush1.bf16.msra.mxu0 0
    %164 = vmatprep.subr.bf16.mxu0 0
    %165 = vmatpush1.bf16.msra.mxu0 0
    %166 = vmatprep.subr.bf16.mxu0 0
    %167 = vmatpush1.bf16.msra.mxu0 0
    %168 = vmatprep.subr.bf16.mxu0 0
    %169 = vmatpush1.bf16.msra.mxu0 0
    %170 = vmatprep.subr.bf16.mxu0 0
    %171 = vmatpush1.bf16.msra.mxu0 0
    %172 = vmatprep.mubr.bf16.mxu0 0
    %173 = vmatmul.mubr.bf16.gmra.mrb[0].mxu0 %v71
    %v174 = vpop.f32.mrb[0].mxu0
    %v175 = vadd.f32 %v91, %v174
    %v176 = vpop.f32.mrb[0].mxu0
    %v177 = vpop.f32.mrb[0].mxu0
    %v178 = vpop.f32.mrb[0].mxu0
    %179 = vdwg.mxu0
    %v180 = vmax.f32 %v175, 0.0
    %v181 = vrot.slane %v180, 4
    %v182 = vadd.f32 %v180, %v181
    %v183 = vrot.slane %v182, 2
    %v184 = vadd.f32 %v182, %v183
    %v185 = vrot.slane %v184, 1
    %v186 = vadd.f32 %v184, %v185
    %v187 = vmul.f32 %v180, %v180
    %v188 = vrot.slane %v187, 4
    %v189 = vadd.f32 %v187, %v188
    %v190 = vrot.slane %v189, 2
    %v191 = vadd.f32 %v189, %v190
    %v192 = vrot.slane %v191, 1
    %v193 = vadd.f32 %v191, %v192
    %v194 = vmul.f32 %v186, 0.125
    %v195 = vmul.f32 %v193, 0.125
    %v196 = vmul.f32 %v194, %v194
    %v197 = vsub.f32 %v195, %v196
    %v198 = vmax.f32 %v197, 0.0
    %v199 = vsub.f32 %v180, %v194
    %v200 = vadd.f32 %v198, 1e-05
    %v201 = vrsqrt.pop %v200
    %v202 = vmul.f32 %v199, %v201
    %v203 = vlaneseq
    %v204 = vshrl.u32 %v203, 7
    %v205 = vsub.s32 1, %v204
    %v206 = vrot.slane %v70, %v205
    %v207 = vmul.f32 %v202, %v206
    %v208 = vlaneseq
    %v209 = vshrl.u32 %v208, 7
    %v210 = vsub.s32 2, %v209
    %v211 = vrot.slane %v70, %v210
    %v212 = vadd.f32 %v207, %v211
    %v213 = vld [vmem:[%s4] sm:$0x7]
    %v214 = vpack.c.bf16 %v212, %v212
    %v215 = vld [vmem:[#allocation5] sm:$0xf]
    %v216 = vld [vmem:[#allocation5 + $0x4] sm:$0xf]
    %v217 = vld [vmem:[#allocation5 + $0x8] sm:$0xf]
    %v218 = vld [vmem:[#allocation5 + $0xc] sm:$0xf]
    %v219 = vld [vmem:[#allocation5 + $0x10] sm:$0xf]
    %v220 = vld [vmem:[#allocation5 + $0x14] sm:$0xf]
    %v221 = vld [vmem:[#allocation5 + $0x18] sm:$0xf]
    %v222 = vld [vmem:[#allocation5 + $0x1c] sm:$0xf]
    %v223 = vld [vmem:[#allocation5 + $0x20] sm:$0xf]
    %v224 = vld [vmem:[#allocation5 + $0x24] sm:$0xf]
    %v225 = vld [vmem:[#allocation5 + $0x28] sm:$0xf]
    %v226 = vld [vmem:[#allocation5 + $0x2c] sm:$0xf]
    %v227 = vld [vmem:[#allocation5 + $0x30] sm:$0xf]
    %v228 = vld [vmem:[#allocation5 + $0x34] sm:$0xf]
    %v229 = vld [vmem:[#allocation5 + $0x38] sm:$0xf]
    %v230 = vld [vmem:[#allocation5 + $0x3c] sm:$0xf]
    %v231 = vlaneseq
    %v232 = vshrl.u32 %v231, 7
    %v233 = vsub.s32 0, %v232
    %v234 = vrot.slane %v213, %v233
    %v251 = vunpack.c.l.b16 %v215
    %v252 = vunpack.c.l.b16 %v216
    %v253 = vunpack.c.l.b16 %v217
    %v254 = vunpack.c.l.b16 %v218
    %v255 = vunpack.c.l.b16 %v219
    %v256 = vunpack.c.l.b16 %v220
    %v257 = vunpack.c.l.b16 %v221
    %v258 = vunpack.c.l.b16 %v222
    %v259 = vunpack.c.l.b16 %v223
    %v260 = vunpack.c.l.b16 %v224
    %v261 = vunpack.c.l.b16 %v225
    %v262 = vunpack.c.l.b16 %v226
    %v263 = vunpack.c.l.b16 %v227
    %v264 = vunpack.c.l.b16 %v228
    %v265 = vunpack.c.l.b16 %v229
    %v266 = vunpack.c.l.b16 %v230
    %v267 = vpack.c.b16 %v252, %v251
    %v268 = vpack.c.b16 %v254, %v253
    %v269 = vpack.c.b16 %v256, %v255
    %v270 = vpack.c.b16 %v258, %v257
    %v271 = vpack.c.b16 %v260, %v259
    %v272 = vpack.c.b16 %v262, %v261
    %v273 = vpack.c.b16 %v264, %v263
    %v274 = vpack.c.b16 %v266, %v265
    %283 = vmatprep.subr.bf16.mxu0 0
    %284 = vmatpush1.bf16.msra.mxu0 %v267
    %285 = vmatprep.subr.bf16.mxu0 0
    %286 = vmatpush1.bf16.msra.mxu0 %v268
    %287 = vmatprep.subr.bf16.mxu0 0
    %288 = vmatpush1.bf16.msra.mxu0 %v269
    %289 = vmatprep.subr.bf16.mxu0 0
    %290 = vmatpush1.bf16.msra.mxu0 %v270
    %291 = vmatprep.subr.bf16.mxu0 0
    %292 = vmatpush1.bf16.msra.mxu0 %v271
    %293 = vmatprep.subr.bf16.mxu0 0
    %294 = vmatpush1.bf16.msra.mxu0 %v272
    %295 = vmatprep.subr.bf16.mxu0 0
    %296 = vmatpush1.bf16.msra.mxu0 %v273
    %297 = vmatprep.subr.bf16.mxu0 0
    %298 = vmatpush1.bf16.msra.mxu0 %v274
    %299 = vmatprep.subr.bf16.mxu0 0
    %300 = vmatpush1.bf16.msra.mxu0 0
    %301 = vmatprep.subr.bf16.mxu0 0
    %302 = vmatpush1.bf16.msra.mxu0 0
    %303 = vmatprep.subr.bf16.mxu0 0
    %304 = vmatpush1.bf16.msra.mxu0 0
    %305 = vmatprep.subr.bf16.mxu0 0
    %306 = vmatpush1.bf16.msra.mxu0 0
    %307 = vmatprep.subr.bf16.mxu0 0
    %308 = vmatpush1.bf16.msra.mxu0 0
    %309 = vmatprep.subr.bf16.mxu0 0
    %310 = vmatpush1.bf16.msra.mxu0 0
    %311 = vmatprep.subr.bf16.mxu0 0
    %312 = vmatpush1.bf16.msra.mxu0 0
    %313 = vmatprep.subr.bf16.mxu0 0
    %314 = vmatpush1.bf16.msra.mxu0 0
    %315 = vmatprep.mubr.bf16.mxu0 0
    %316 = vmatmul.mubr.bf16.gmra.mrb[0].mxu0 %v214
    %v317 = vpop.f32.mrb[0].mxu0
    %v318 = vadd.f32 %v234, %v317
    %v319 = vpop.f32.mrb[0].mxu0
    %v320 = vpop.f32.mrb[0].mxu0
    %v321 = vpop.f32.mrb[0].mxu0
    %322 = vdwg.mxu0
    %v323 = vmax.f32 %v318, 0.0
    %v324 = vrot.slane %v323, 4
    %v325 = vadd.f32 %v323, %v324
    %v326 = vrot.slane %v325, 2
    %v327 = vadd.f32 %v325, %v326
    %v328 = vrot.slane %v327, 1
    %v329 = vadd.f32 %v327, %v328
    %v330 = vmul.f32 %v323, %v323
    %v331 = vrot.slane %v330, 4
    %v332 = vadd.f32 %v330, %v331
    %v333 = vrot.slane %v332, 2
    %v334 = vadd.f32 %v332, %v333
    %v335 = vrot.slane %v334, 1
    %v336 = vadd.f32 %v334, %v335
    %v337 = vmul.f32 %v329, 0.125
    %v338 = vmul.f32 %v336, 0.125
    %v339 = vmul.f32 %v337, %v337
    %v340 = vsub.f32 %v338, %v339
    %v341 = vmax.f32 %v340, 0.0
    %v342 = vsub.f32 %v323, %v337
    %v343 = vadd.f32 %v341, 1e-05
    %v344 = vrsqrt.pop %v343
    %v345 = vmul.f32 %v342, %v344
    %v346 = vlaneseq
    %v347 = vshrl.u32 %v346, 7
    %v348 = vsub.s32 1, %v347
    %v349 = vrot.slane %v213, %v348
    %v350 = vmul.f32 %v345, %v349
    %v351 = vlaneseq
    %v352 = vshrl.u32 %v351, 7
    %v353 = vsub.s32 2, %v352
    %v354 = vrot.slane %v213, %v353
    %v355 = vadd.f32 %v350, %v354
    %v356 = vpack.c.bf16 %v355, %v355
    %v357 = vld [vmem:[#allocation7] sm:$0xf]
    %v358 = vld [vmem:[#allocation7 + $0x4] sm:$0xf]
    %v359 = vld [vmem:[#allocation7 + $0x8] sm:$0xf]
    %v360 = vld [vmem:[#allocation7 + $0xc] sm:$0xf]
    %v361 = vld [vmem:[#allocation7 + $0x10] sm:$0xf]
    %v362 = vld [vmem:[#allocation7 + $0x14] sm:$0xf]
    %v363 = vld [vmem:[#allocation7 + $0x18] sm:$0xf]
    %v364 = vld [vmem:[#allocation7 + $0x1c] sm:$0xf]
    %v365 = vld [vmem:[#allocation7 + $0x20] sm:$0xf]
    %v366 = vld [vmem:[#allocation7 + $0x24] sm:$0xf]
    %v367 = vld [vmem:[#allocation7 + $0x28] sm:$0xf]
    %v368 = vld [vmem:[#allocation7 + $0x2c] sm:$0xf]
    %v369 = vld [vmem:[#allocation7 + $0x30] sm:$0xf]
    %v370 = vld [vmem:[#allocation7 + $0x34] sm:$0xf]
    %v371 = vld [vmem:[#allocation7 + $0x38] sm:$0xf]
    %v372 = vld [vmem:[#allocation7 + $0x3c] sm:$0xf]
    %v373 = vld [vmem:[%s6] sm:$0x1]
    %v375 = vlaneseq
    %v376 = vshrl.u32 %v375, 7
    %v377 = vsub.s32 0, %v376
    %v378 = vrot.slane %v373, %v377
    %v396 = vunpack.c.l.b16 %v357
    %v397 = vunpack.c.l.b16 %v358
    %v398 = vunpack.c.l.b16 %v359
    %v399 = vunpack.c.l.b16 %v360
    %v400 = vunpack.c.l.b16 %v361
    %v401 = vunpack.c.l.b16 %v362
    %v402 = vunpack.c.l.b16 %v363
    %v403 = vunpack.c.l.b16 %v364
    %v404 = vunpack.c.l.b16 %v365
    %v405 = vunpack.c.l.b16 %v366
    %v406 = vunpack.c.l.b16 %v367
    %v407 = vunpack.c.l.b16 %v368
    %v408 = vunpack.c.l.b16 %v369
    %v409 = vunpack.c.l.b16 %v370
    %v410 = vunpack.c.l.b16 %v371
    %v411 = vunpack.c.l.b16 %v372
    %v412 = vpack.c.b16 %v397, %v396
    %v413 = vpack.c.b16 %v399, %v398
    %v414 = vpack.c.b16 %v401, %v400
    %v415 = vpack.c.b16 %v403, %v402
    %v416 = vpack.c.b16 %v405, %v404
    %v417 = vpack.c.b16 %v407, %v406
    %v418 = vpack.c.b16 %v409, %v408
    %v419 = vpack.c.b16 %v411, %v410
    %428 = vmatprep.subr.bf16.mxu0 0
    %429 = vmatpush1.bf16.msra.mxu0 %v412
    %430 = vmatprep.subr.bf16.mxu0 0
    %431 = vmatpush1.bf16.msra.mxu0 %v413
    %432 = vmatprep.subr.bf16.mxu0 0
    %433 = vmatpush1.bf16.msra.mxu0 %v414
    %434 = vmatprep.subr.bf16.mxu0 0
    %435 = vmatpush1.bf16.msra.mxu0 %v415
    %436 = vmatprep.subr.bf16.mxu0 0
    %437 = vmatpush1.bf16.msra.mxu0 %v416
    %438 = vmatprep.subr.bf16.mxu0 0
    %439 = vmatpush1.bf16.msra.mxu0 %v417
    %440 = vmatprep.subr.bf16.mxu0 0
    %441 = vmatpush1.bf16.msra.mxu0 %v418
    %442 = vmatprep.subr.bf16.mxu0 0
    %443 = vmatpush1.bf16.msra.mxu0 %v419
    %444 = vmatprep.subr.bf16.mxu0 0
    %445 = vmatpush1.bf16.msra.mxu0 0
    %446 = vmatprep.subr.bf16.mxu0 0
    %447 = vmatpush1.bf16.msra.mxu0 0
    %448 = vmatprep.subr.bf16.mxu0 0
    %449 = vmatpush1.bf16.msra.mxu0 0
    %450 = vmatprep.subr.bf16.mxu0 0
    %451 = vmatpush1.bf16.msra.mxu0 0
    %452 = vmatprep.subr.bf16.mxu0 0
    %453 = vmatpush1.bf16.msra.mxu0 0
    %454 = vmatprep.subr.bf16.mxu0 0
    %455 = vmatpush1.bf16.msra.mxu0 0
    %456 = vmatprep.subr.bf16.mxu0 0
    %457 = vmatpush1.bf16.msra.mxu0 0
    %458 = vmatprep.subr.bf16.mxu0 0
    %459 = vmatpush1.bf16.msra.mxu0 0
    %460 = vmatprep.mubr.bf16.mxu0 0
    %461 = vmatmul.mubr.bf16.gmra.mrb[0].mxu0 %v356
    %v462 = vpop.f32.mrb[0].mxu0
    %v463 = vadd.f32 %v378, %v462
    %v464 = vpop.f32.mrb[0].mxu0
    %v465 = vpop.f32.mrb[0].mxu0
    %v466 = vpop.f32.mrb[0].mxu0
    %467 = vdwg.mxu0
    %468 = vst [vmem:[#allocation8] sm:$0xff] %v463
    // Predicated region
    $region42: #{gtdqn_forward.1} parent=1 // pred_check
      _
    $region43: #{gtdqn_forward.1} parent=1 // pred_check_branch
      %470 = sbr.rel (0) target = $region45
    $region44: #{gtdqn_forward.1} parent=1 // pred_region
      %s472 = ssub.s32 128, 128
      %473 = vsyncadd [#allocation4], %s472
      %s475 = sshll.u32 [#allocation8], 4
      %s476 = int_to_ptr.vmem [resolvable:$true] %s475
      %478 = dma.vmem_to_hbm [thread:$0]  %s476, 128, %s7, [#allocation4]
    $region45: #{gtdqn_forward.1} parent=1 // pred_fallthru
      _
    // Predicated region
    $region46: #{gtdqn_forward.1} parent=1 // pred_check
      _
    $region47: #{gtdqn_forward.1} parent=1 // pred_check_branch
      %480 = sbr.rel (0) target = $region49
    $region48: #{gtdqn_forward.1} parent=1 // pred_region
      %481 = dma.done [#allocation4], 128
    $region49: #{gtdqn_forward.1} parent=1 // pred_fallthru
      _
    %482 = vsyncpa [#allocation3], 1
    %483 = vsyncpa [#allocation6], 1
    %484 = vsyncpa [#allocation4], 1

</llo_original>
